<compile_context>
chip_gen: v6e
topology: v6e:2x2x1
jax: 0.10.0
libtpu: 0.0.40
codegen_flags: <defaults>
</compile_context>

<pallas_src>
import functools

import jax
import jax.numpy as jnp
from jax.experimental import pallas as pl
from jax.experimental.pallas import tpu as pltpu

NUM_CLASSES = 6          # fc2 output dim in the PyTorch module
LANE = 128               # lane width (last-dim padding target for H and C)
SUBLANE = 8              # f32 sublane width (batch-tile granularity)
MAX_TB = 256             # batch-tile cap (keeps the f32 `h` tile off the spill path)
VMEM_BUDGET = 12 << 20   # per-step working-set budget; fits v5e's 16 MiB scoped default


def _round_up(n, m):
    return (n + m - 1) // m * m


def _cdiv(a, b):
    return (a + b - 1) // b


def mlp_kernel(x_ref, w1_ref, b1_ref, w2_ref, b2_ref, o_ref):
    # x arrives as f32 straight from HBM; cast to bf16 in VMEM (no padded-x
    # round trip through HBM).  fc1 on the MXU with f32 accumulation.
    x = x_ref[...].astype(jnp.bfloat16)
    h = jnp.dot(x, w1_ref[...], preferred_element_type=jnp.float32)
    # Bias add + ReLU in f32 on the VPU.
    h = jnp.maximum(h + b1_ref[...], 0.0)
    # fc2: explicit bf16 downcast of activations for the MXU, f32 accumulation.
    o = jnp.dot(h.astype(jnp.bfloat16), w2_ref[...],
                preferred_element_type=jnp.float32)
    # Lane-dense (TB, 128-multiple) store -> unmasked vst.
    o_ref[...] = (o + b2_ref[...]).astype(o_ref.dtype)


def prepare_params(w1, b1, w2, b2):
    """One-time lane padding + bf16 cast of the weights (hoisted out of forward).

    w1: [F, H]; b1: [H] or [1, H]; w2: [H, C]; b2: [C] or [1, C]
    (weights are the transpose of PyTorch nn.Linear's [out, in] layout).
    Zero padding leaves the math unchanged (zero rows/cols, zero biases).
    """
    F, H = w1.shape
    C = w2.shape[1]
    Hp = _round_up(H, LANE)
    Cp = _round_up(C, LANE)
    w1p = jnp.zeros((F, Hp), jnp.bfloat16).at[:, :H].set(w1.astype(jnp.bfloat16))
    b1p = jnp.zeros((1, Hp), jnp.float32).at[:, :H].set(
        b1.reshape(1, H).astype(jnp.float32))
    w2p = jnp.zeros((Hp, Cp), jnp.bfloat16).at[:H, :C].set(w2.astype(jnp.bfloat16))
    b2p = jnp.zeros((1, Cp), jnp.float32).at[:, :C].set(
        b2.reshape(1, C).astype(jnp.float32))
    return w1p, b1p, w2p, b2p


def _pick_batch_tile(B, F, Hp, Cp):
    """Adaptive batch tile: >=2 tiles for non-trivial B (software pipelining +
    v7x's two TensorCores), minimal padding waste, bounded VMEM working set."""
    n_tiles = 1 if B <= 2 * SUBLANE else max(2, _cdiv(B, MAX_TB))
    tb = _round_up(_cdiv(B, n_tiles), SUBLANE)

    def est(t):
        return (2 * t * F * 4                      # x tile, double-buffered, f32
                + 2 * t * Cp * 4                   # out tile, double-buffered, f32
                + t * Hp * 4 + t * Cp * 4          # in-body f32 temporaries
                + 2 * (F * Hp * 2 + Hp * Cp * 2    # resident weights (worst case
                       + Hp * 4 + Cp * 4))         #  if single-buffering is ignored)

    while tb > SUBLANE and est(tb) > VMEM_BUDGET:
        tb = _round_up(tb // 2, SUBLANE)
    return tb, est(tb)


def _resident_spec(block_shape):
    """BlockSpec for an operand resident in VMEM across the whole grid
    (constant index_map); request single-buffering when supported."""
    try:
        return pl.BlockSpec(block_shape, lambda i: (0, 0),
                            pipeline_mode=pl.Buffered(1))
    except Exception:  # older BlockSpec without pipeline_mode support
        return pl.BlockSpec(block_shape, lambda i: (0, 0))


@functools.partial(jax.jit, static_argnames=("num_classes",))
def mlp_net_forward(x, w1p, b1p, w2p, b2p, *, num_classes=NUM_CLASSES):
    """Fused MLPNet forward: relu(x @ W1 + b1) @ W2 + b2 -> [B, num_classes]."""
    B, F = x.shape
    Fw, Hp = w1p.shape
    Cp = w2p.shape[1]
    assert Fw == F, "weights must be pre-padded with prepare_params for this F"

    TB, est_bytes = _pick_batch_tile(B, F, Hp, Cp)
    # Partial last tile (B % TB != 0) is handled by Pallas: out-of-bounds
    # output rows are dropped; the valid rows are unaffected.
    grid = (_cdiv(B, TB),)

    cost = pl.CostEstimate(
        flops=2 * B * (F * Hp + Hp * Cp),
        transcendentals=0,
        bytes_accessed=(B * F * 4 + F * Hp * 2 + Hp * Cp * 2
                        + Hp * 4 + Cp * 4 + B * Cp * 4),
    )
    vmem_limit = int(min(max(2 * est_bytes, 16 << 20), 64 << 20))

    out_p = pl.pallas_call(
        mlp_kernel,
        out_shape=jax.ShapeDtypeStruct((B, Cp), jnp.float32),
        grid_spec=pltpu.PrefetchScalarGridSpec(
            num_scalar_prefetch=0,
            grid=grid,
            in_specs=[
                pl.BlockSpec((TB, F), lambda i: (i, 0)),  # x: streamed over batch
                _resident_spec((F, Hp)),                  # W1: resident in VMEM
                _resident_spec((1, Hp)),                  # b1: resident
                _resident_spec((Hp, Cp)),                 # W2: resident
                _resident_spec((1, Cp)),                  # b2: resident
            ],
            out_specs=pl.BlockSpec((TB, Cp), lambda i: (i, 0)),  # lane-dense out
        ),
        compiler_params=pltpu.CompilerParams(
            dimension_semantics=("parallel",),   # batch tiles shard across TCs
            vmem_limit_bytes=vmem_limit,
        ),
        cost_estimate=cost,
    )(x, w1p, b1p, w2p, b2p)

    # Slice the lane padding back off -> true [B, num_classes] logits.
    return out_p[:, :num_classes]


def init_params(key, num_feature, hidden_dim):
    """Deterministic init mirroring nn.Linear's U(-1/sqrt(fan_in), 1/sqrt(fan_in))."""
    k1, k2, k3, k4 = jax.random.split(key, 4)
    bound1 = 1.0 / jnp.sqrt(jnp.float32(num_feature))
    bound2 = 1.0 / jnp.sqrt(jnp.float32(hidden_dim))
    w1 = jax.random.uniform(k1, (num_feature, hidden_dim), jnp.float32,
                            -bound1, bound1)
    b1 = jax.random.uniform(k2, (1, hidden_dim), jnp.float32, -bound1, bound1)
    w2 = jax.random.uniform(k3, (hidden_dim, NUM_CLASSES), jnp.float32,
                            -bound2, bound2)
    b2 = jax.random.uniform(k4, (1, NUM_CLASSES), jnp.float32, -bound2, bound2)
    return w1, b1, w2, b2


if __name__ == "__main__":
    batch_size = 64      # > 16 -> forward runs 2 "parallel" batch tiles of 32
    num_feature = 64
    hidden_dim = 32

    key = jax.random.PRNGKey(0)
    kx, kp = jax.random.split(key)
    x = jax.random.normal(kx, (batch_size, num_feature), jnp.float32)
    w1, b1, w2, b2 = init_params(kp, num_feature, hidden_dim)

    # One-time weight padding / bf16 cast, hoisted out of the per-call forward.
    params_p = jax.tree_util.tree_map(jax.block_until_ready,
                                      prepare_params(w1, b1, w2, b2))

    out = mlp_net_forward(x, *params_p, num_classes=NUM_CLASSES)
    out = jax.block_until_ready(out)
    assert out.shape == (batch_size, NUM_CLASSES), out.shape
    assert bool(jnp.all(jnp.isfinite(out)))

    # Reference with identical bf16-operand / f32-accumulation semantics.
    h_ref = jnp.maximum(
        jnp.dot(x.astype(jnp.bfloat16), w1.astype(jnp.bfloat16),
                preferred_element_type=jnp.float32) + b1, 0.0)
    ref_bf16 = jnp.dot(h_ref.astype(jnp.bfloat16), w2.astype(jnp.bfloat16),
                       preferred_element_type=jnp.float32) + b2
    err = float(jnp.max(jnp.abs(out - ref_bf16)))
    assert err < 2e-3, err

    # Loose check against the pure-f32 PyTorch-semantics reference.
    ref_f32 = jnp.maximum(x @ w1 + b1, 0.0) @ w2 + b2
    err32 = float(jnp.max(jnp.abs(out - ref_f32)))
    assert err32 < 5e-2, err32

    print("KERNEL_OK")
</pallas_src>

<mosaic_0001>
module attributes {stable_mosaic.version = 11 : i64} {
  func.func @mlp_kernel(%arg0: i32, %arg1: memref<32x64xf32, #tpu.memory_space<vmem>>, %arg2: memref<64x128xbf16, #tpu.memory_space<vmem>>, %arg3: memref<1x128xf32, #tpu.memory_space<vmem>>, %arg4: memref<128x128xbf16, #tpu.memory_space<vmem>>, %arg5: memref<1x128xf32, #tpu.memory_space<vmem>>, %arg6: memref<32x128xf32, #tpu.memory_space<vmem>>) attributes {dimension_semantics = [#tpu.dimension_semantics<parallel>], iteration_bounds = array<i64: 2>, scalar_prefetch = 0 : i64, scratch_operands = 0 : i64, tpu.core_type = #tpu.core_type<tc>, window_params = [{transform_indices = @transform_0, window_bounds = array<i64: 32, 64>}, {pipeline_mode = #tpu.pipeline_mode<synchronous>, transform_indices = @transform_1, window_bounds = array<i64: 64, 128>}, {pipeline_mode = #tpu.pipeline_mode<synchronous>, transform_indices = @transform_2, window_bounds = array<i64: 1, 128>}, {pipeline_mode = #tpu.pipeline_mode<synchronous>, transform_indices = @transform_3, window_bounds = array<i64: 128, 128>}, {pipeline_mode = #tpu.pipeline_mode<synchronous>, transform_indices = @transform_4, window_bounds = array<i64: 1, 128>}, {transform_indices = @transform_5, window_bounds = array<i64: 32, 128>}]} {
    %c0 = arith.constant 0 : index
    %c0_0 = arith.constant 0 : index
    %0 = vector.load %arg1[%c0, %c0_0] : memref<32x64xf32, #tpu.memory_space<vmem>>, vector<32x64xf32>
    %1 = arith.truncf %0 : vector<32x64xf32> to vector<32x64xbf16>
    %c0_1 = arith.constant 0 : index
    %c0_2 = arith.constant 0 : index
    %2 = vector.load %arg2[%c0_1, %c0_2] : memref<64x128xbf16, #tpu.memory_space<vmem>>, vector<64x128xbf16>
    %cst = arith.constant dense<0.000000e+00> : vector<32x128xf32>
    %3 = tpu.matmul %1, %2, %cst {dimension_numbers = #tpu.dot_dimension_numbers<[1], [0], [0], [1], [0, 0, 1, 1], [], []>} : vector<32x64xbf16>, vector<64x128xbf16>, vector<32x128xf32> -> vector<32x128xf32>
    %c0_3 = arith.constant 0 : index
    %c0_4 = arith.constant 0 : index
    %4 = vector.load %arg3[%c0_3, %c0_4] : memref<1x128xf32, #tpu.memory_space<vmem>>, vector<1x128xf32>
    %5 = vector.broadcast %4 : vector<1x128xf32> to vector<32x128xf32>
    %6 = arith.addf %3, %5 : vector<32x128xf32>
    %cst_5 = arith.constant 0.000000e+00 : f32
    %7 = vector.broadcast %cst_5 : f32 to vector<32x128xf32>
    %8 = arith.maximumf %6, %7 : vector<32x128xf32>
    %9 = arith.truncf %8 : vector<32x128xf32> to vector<32x128xbf16>
    %c0_6 = arith.constant 0 : index
    %c0_7 = arith.constant 0 : index
    %10 = vector.load %arg4[%c0_6, %c0_7] : memref<128x128xbf16, #tpu.memory_space<vmem>>, vector<128x128xbf16>
    %cst_8 = arith.constant dense<0.000000e+00> : vector<32x128xf32>
    %11 = tpu.matmul %9, %10, %cst_8 {dimension_numbers = #tpu.dot_dimension_numbers<[1], [0], [0], [1], [0, 0, 1, 1], [], []>} : vector<32x128xbf16>, vector<128x128xbf16>, vector<32x128xf32> -> vector<32x128xf32>
    %c0_9 = arith.constant 0 : index
    %c0_10 = arith.constant 0 : index
    %12 = vector.load %arg5[%c0_9, %c0_10] : memref<1x128xf32, #tpu.memory_space<vmem>>, vector<1x128xf32>
    %13 = vector.broadcast %12 : vector<1x128xf32> to vector<32x128xf32>
    %14 = arith.addf %11, %13 : vector<32x128xf32>
    %c0_11 = arith.constant 0 : index
    %c0_12 = arith.constant 0 : index
    %15 = vector.load %arg6[%c0_11, %c0_12] : memref<32x128xf32, #tpu.memory_space<vmem>>, vector<32x128xf32>
    tpu.vector_store %arg6[%c0_11, %c0_12], %14 {strides = array<i32>} : memref<32x128xf32, #tpu.memory_space<vmem>>, vector<32x128xf32>,
    return
  }
  func.func @transform_0(%arg0: i32) -> (i32, i32) {
    %c0_i32 = arith.constant 0 : i32
    %c0_i32_0 = arith.constant 0 : i32
    return %arg0, %c0_i32 : i32, i32
  }
  func.func @transform_1(%arg0: i32) -> (i32, i32) {
    %c0_i32 = arith.constant 0 : i32
    %c0_i32_0 = arith.constant 0 : i32
    %c0_i32_1 = arith.constant 0 : i32
    return %c0_i32, %c0_i32_0 : i32, i32
  }
  func.func @transform_2(%arg0: i32) -> (i32, i32) {
    %c0_i32 = arith.constant 0 : i32
    %c0_i32_0 = arith.constant 0 : i32
    %c0_i32_1 = arith.constant 0 : i32
    return %c0_i32, %c0_i32_0 : i32, i32
  }
  func.func @transform_3(%arg0: i32) -> (i32, i32) {
    %c0_i32 = arith.constant 0 : i32
    %c0_i32_0 = arith.constant 0 : i32
    %c0_i32_1 = arith.constant 0 : i32
    return %c0_i32, %c0_i32_0 : i32, i32
  }
  func.func @transform_4(%arg0: i32) -> (i32, i32) {
    %c0_i32 = arith.constant 0 : i32
    %c0_i32_0 = arith.constant 0 : i32
    %c0_i32_1 = arith.constant 0 : i32
    return %c0_i32, %c0_i32_0 : i32, i32
  }
  func.func @transform_5(%arg0: i32) -> (i32, i32) {
    %c0_i32 = arith.constant 0 : i32
    %c0_i32_0 = arith.constant 0 : i32
    return %arg0, %c0_i32 : i32, i32
  }
}

</mosaic_0001>

<llo_original>
// kernel: mlp_net_forward.1
$region0: #{mlp_net_forward.1}
  #allocation0 [shape = 'u32[]', space=smem, size = 0x4, offset = 0x4, fixed_abs, tag = 'smem constant byte address 0x4 - core index']
  #allocation1 [shape = 'u32[144,128]{1,0:T(1,128)}', space=vmem, size = 0x12000, scoped, tag = 'internal scratch']
  %s0 = inlined_call_operand.hbm [shape: f32[64,64], index: 0, kind: input, shape index: {}]
  %s1 = inlined_call_operand.hbm [shape: bf16[64,128], index: 1, kind: input, shape index: {}]
  %s2 = inlined_call_operand.vmem [shape: f32[1,128], index: 2, kind: input, shape index: {}]
  %s3 = inlined_call_operand.hbm [shape: bf16[128,128], index: 3, kind: input, shape index: {}]
  %s4 = inlined_call_operand.vmem [shape: f32[1,128], index: 4, kind: input, shape index: {}]
  %s5 = inlined_call_operand.vmem [shape: f32[64,128], index: 5, kind: output, shape index: {}]
  %s6 = sld [smem:[#allocation0]]
  $region65: #{mlp_net_forward.1} parent=0
    _
  %s8 = ssub.s32 1, %s6
  %s9 = scalar_select 0, %s8, %s6
  $region1: #{mlp_net_forward.1} parent=0
    #allocation2 [shape = 'u8[32768]{0}', space=vmem, size = 0x8000, scoped, tag = 'input window, operand 0']
    #allocation3 [shape = 's32[2]{0}', space=sflag, size = 0x8, scoped, tag = 'scoped memory for mlp_net_forward.1']
    #allocation4 [shape = 'u8[16384]{0}', space=vmem, size = 0x4000, scoped, tag = 'input window, operand 1, single buffered']
    #allocation5 [shape = 's32[1]{0}', space=sflag, size = 0x4, scoped, tag = 'scoped memory for mlp_net_forward.1']
    #allocation6 [shape = 'u8[32768]{0}', space=vmem, size = 0x8000, scoped, tag = 'input window, operand 3, single buffered']
    %10 = vsyncpa [#allocation3], 0
    %s11 = scalar_lea.sflag [#allocation3], 1
    %12 = vsyncpa %s11, 0
    %13 = vsyncpa [#allocation5], 0
    loop: start=0, step=1, limit=4
    $region2: #{mlp_net_forward.1} parent=1 // loop_pre_header
      _
    $region3: #{mlp_net_forward.1} parent=1 // loop_header
      %s15 = sphi 0, %s19
      %p16 = scmp.ge.s32.totalorder %s15, 4
      %s25 = sphi 0, %s27
      %s28 = sphi 0, %s25
      %s29 = sphi 0, %s28
      %s45 = sphi 0, %s29
      %s49 = sphi 0, %s49
      %s51 = sphi 0, %s49
      %s52 = sphi 0, %s51
      %s66 = sphi 0, %s52
      %s70 = sphi 0, %s70
      %s72 = sphi 0, %s70
      %s73 = sphi 0, %s72
      %s87 = sphi 0, %s73
      %s91 = sphi 0, %s91
      %s93 = sphi 0, %s91
      %s94 = sphi 0, %s93
      %s108 = sphi 0, %s94
      %s112 = sphi 0, %s112
      %s114 = sphi 0, %s112
      %s115 = sphi 0, %s114
      %s129 = sphi 0, %s115
      %s135 = sphi 0, %s137
      %s138 = sphi 0, %s135
      %s139 = sphi 0, %s138
      %s155 = sphi 0, %s139
    $region4: #{mlp_net_forward.1} parent=1 // loop_header_branch
      %18 = sbr.rel (%p16) target = $region8
    $region5: #{mlp_net_forward.1} parent=1 // loop_body
      %s20 = ssub.s32 %s15, 1
      %s21 = ssub.s32 %s15, 2
      %s22 = sadd.s32 %s15, 1
      %s23 = ssub.s32 %s15, %s22
      %p24 = scmp.eq.s32.totalorder %s23, 0
      %s26 = sadd.s32 %s25, 1
      %s27 = scalar_select %p24, %s25, %s26
      %p30 = pneg %p24
      %p31 = scmp.eq.s32.totalorder %s15, 1
      %p32 = por %p30, %p31
      %p33 = scmp.ne.s32.totalorder %s25, %s28
      %p34 = scmp.eq.s32.totalorder %s15, 0
      %p35 = por %p33, %p34
      %p36 = scmp.ne.s32.totalorder %s25, %s28
      %p37 = scmp.eq.s32.totalorder %s20, 1
      %p38 = por %p36, %p37
      %p39 = scmp.ne.s32.totalorder %s28, %s29
      %p40 = scmp.eq.s32.totalorder %s20, 0
      %p41 = por %p39, %p40
      %p42 = scmp.ne.s32.totalorder %s28, %s29
      %p43 = scmp.eq.s32.totalorder %s21, 1
      %p44 = por %p42, %p43
      %p46 = scmp.ne.s32.totalorder %s29, %s45
      %p47 = scmp.eq.s32.totalorder %s21, 0
      %p48 = por %p46, %p47
      %s50 = sadd.s32 %s49, 1
      %p53 = scmp.eq.s32.totalorder %s15, 1
      %p54 = scmp.ne.s32.totalorder %s49, %s51
      %p55 = scmp.eq.s32.totalorder %s15, 0
      %p56 = por %p54, %p55
      %p57 = scmp.ne.s32.totalorder %s49, %s51
      %p58 = scmp.eq.s32.totalorder %s20, 1
      %p59 = por %p57, %p58
      %p60 = scmp.ne.s32.totalorder %s51, %s52
      %p61 = scmp.eq.s32.totalorder %s20, 0
      %p62 = por %p60, %p61
      %p63 = scmp.ne.s32.totalorder %s51, %s52
      %p64 = scmp.eq.s32.totalorder %s21, 1
      %p65 = por %p63, %p64
      %p67 = scmp.ne.s32.totalorder %s52, %s66
      %p68 = scmp.eq.s32.totalorder %s21, 0
      %p69 = por %p67, %p68
      %s71 = sadd.s32 %s70, 1
      %p74 = scmp.eq.s32.totalorder %s15, 1
      %p75 = scmp.ne.s32.totalorder %s70, %s72
      %p76 = scmp.eq.s32.totalorder %s15, 0
      %p77 = por %p75, %p76
      %p78 = scmp.ne.s32.totalorder %s70, %s72
      %p79 = scmp.eq.s32.totalorder %s20, 1
      %p80 = por %p78, %p79
      %p81 = scmp.ne.s32.totalorder %s72, %s73
      %p82 = scmp.eq.s32.totalorder %s20, 0
      %p83 = por %p81, %p82
      %p84 = scmp.ne.s32.totalorder %s72, %s73
      %p85 = scmp.eq.s32.totalorder %s21, 1
      %p86 = por %p84, %p85
      %p88 = scmp.ne.s32.totalorder %s73, %s87
      %p89 = scmp.eq.s32.totalorder %s21, 0
      %p90 = por %p88, %p89
      %s92 = sadd.s32 %s91, 1
      %p95 = scmp.eq.s32.totalorder %s15, 1
      %p96 = scmp.ne.s32.totalorder %s91, %s93
      %p97 = scmp.eq.s32.totalorder %s15, 0
      %p98 = por %p96, %p97
      %p99 = scmp.ne.s32.totalorder %s91, %s93
      %p100 = scmp.eq.s32.totalorder %s20, 1
      %p101 = por %p99, %p100
      %p102 = scmp.ne.s32.totalorder %s93, %s94
      %p103 = scmp.eq.s32.totalorder %s20, 0
      %p104 = por %p102, %p103
      %p105 = scmp.ne.s32.totalorder %s93, %s94
      %p106 = scmp.eq.s32.totalorder %s21, 1
      %p107 = por %p105, %p106
      %p109 = scmp.ne.s32.totalorder %s94, %s108
      %p110 = scmp.eq.s32.totalorder %s21, 0
      %p111 = por %p109, %p110
      %s113 = sadd.s32 %s112, 1
      %p116 = scmp.eq.s32.totalorder %s15, 1
      %p117 = scmp.ne.s32.totalorder %s112, %s114
      %p118 = scmp.eq.s32.totalorder %s15, 0
      %p119 = por %p117, %p118
      %p120 = scmp.ne.s32.totalorder %s112, %s114
      %p121 = scmp.eq.s32.totalorder %s20, 1
      %p122 = por %p120, %p121
      %p123 = scmp.ne.s32.totalorder %s114, %s115
      %p124 = scmp.eq.s32.totalorder %s20, 0
      %p125 = por %p123, %p124
      %p126 = scmp.ne.s32.totalorder %s114, %s115
      %p127 = scmp.eq.s32.totalorder %s21, 1
      %p128 = por %p126, %p127
      %p130 = scmp.ne.s32.totalorder %s115, %s129
      %p131 = scmp.eq.s32.totalorder %s21, 0
      %p132 = por %p130, %p131
      %s133 = ssub.s32 %s15, %s22
      %p134 = scmp.eq.s32.totalorder %s133, 0
      %s136 = sadd.s32 %s135, 1
      %s137 = scalar_select %p134, %s135, %s136
      %p140 = pneg %p134
      %p141 = scmp.eq.s32.totalorder %s15, 1
      %p142 = por %p140, %p141
      %p143 = scmp.ne.s32.totalorder %s135, %s138
      %p144 = scmp.eq.s32.totalorder %s15, 0
      %p145 = por %p143, %p144
      %p146 = scmp.ne.s32.totalorder %s135, %s138
      %p147 = scmp.eq.s32.totalorder %s20, 1
      %p148 = por %p146, %p147
      %p149 = scmp.ne.s32.totalorder %s138, %s139
      %p150 = scmp.eq.s32.totalorder %s20, 0
      %p151 = por %p149, %p150
      %p152 = scmp.ne.s32.totalorder %s138, %s139
      %p153 = scmp.eq.s32.totalorder %s21, 1
      %p154 = por %p152, %p153
      %p156 = scmp.ne.s32.totalorder %s139, %s155
      %p157 = scmp.eq.s32.totalorder %s21, 0
      %p158 = por %p156, %p157
      %p159 = scmp.le.s32.totalorder 1, %s15
      %p160 = scmp.lt.s32.totalorder %s15, 3
      %p161 = pnand %p159, %p160
      %p162 = pneg %p161
      // Predicated region
      $region9: #{mlp_net_forward.1} parent=5 // pred_check
        _
      $region10: #{mlp_net_forward.1} parent=5 // pred_check_branch
        %164 = sbr.rel (%p161) target = $region12
      $region11: #{mlp_net_forward.1} parent=5 // pred_region
        %s165 = ssub.s32 %s15, 1
        // Predicated region
        $region13: #{mlp_net_forward.1} parent=11 // pred_check
          %p166 = pneg %p62
        $region14: #{mlp_net_forward.1} parent=11 // pred_check_branch
          %168 = sbr.rel (%p166) target = $region16
        $region15: #{mlp_net_forward.1} parent=11 // pred_region
          %s170 = ssub.s32 512, 512
          %171 = vsyncadd [#allocation5], %s170
          %s172 = sshll.u32 [#allocation4], 4
          %s173 = int_to_ptr.vmem [resolvable:$true] %s172
          %178 = dma.hbm_to_vmem [thread:$0]  %s1, 512, %s173, [#allocation5], 64, 64, 4
        $region16: #{mlp_net_forward.1} parent=11 // pred_fallthru
          _
        // Predicated region
        $region17: #{mlp_net_forward.1} parent=11 // pred_check
          %p179 = pneg %p83
        $region18: #{mlp_net_forward.1} parent=11 // pred_check_branch
          %181 = sbr.rel (%p179) target = $region20
        $region19: #{mlp_net_forward.1} parent=11 // pred_region
          _
        $region20: #{mlp_net_forward.1} parent=11 // pred_fallthru
          _
        // Predicated region
        $region21: #{mlp_net_forward.1} parent=11 // pred_check
          %p182 = pneg %p104
        $region22: #{mlp_net_forward.1} parent=11 // pred_check_branch
          %184 = sbr.rel (%p182) target = $region24
        $region23: #{mlp_net_forward.1} parent=11 // pred_region
          %s186 = ssub.s32 1024, 1024
          %187 = vsyncadd [#allocation5], %s186
          %s188 = sshll.u32 [#allocation6], 4
          %s189 = int_to_ptr.vmem [resolvable:$true] %s188
          %194 = dma.hbm_to_vmem [thread:$0]  %s3, 1024, %s189, [#allocation5], 64, 64, 4
        $region24: #{mlp_net_forward.1} parent=11 // pred_fallthru
          _
        // Predicated region
        $region25: #{mlp_net_forward.1} parent=11 // pred_check
          %p195 = pneg %p125
        $region26: #{mlp_net_forward.1} parent=11 // pred_check_branch
          %197 = sbr.rel (%p195) target = $region28
        $region27: #{mlp_net_forward.1} parent=11 // pred_region
          _
        $region28: #{mlp_net_forward.1} parent=11 // pred_fallthru
          _
      $region12: #{mlp_net_forward.1} parent=5 // pred_fallthru
        _
      %p198 = scmp.lt.s32.totalorder %s15, 2
      // Predicated region
      $region29: #{mlp_net_forward.1} parent=5 // pred_check
        %p199 = pneg %p198
      $region30: #{mlp_net_forward.1} parent=5 // pred_check_branch
        %201 = sbr.rel (%p199) target = $region32
      $region31: #{mlp_net_forward.1} parent=5 // pred_region
        // Predicated region
        $region33: #{mlp_net_forward.1} parent=31 // pred_check
          %p202 = pneg %p35
        $region34: #{mlp_net_forward.1} parent=31 // pred_check_branch
          %204 = sbr.rel (%p202) target = $region36
        $region35: #{mlp_net_forward.1} parent=31 // pred_region
          %s205 = sand.u32 %s25, 1
          %s206 = scalar_lea.sflag [#allocation3], %s205
          %s207 = sand.u32 %s25, 1
          %s208 = smul.addr %s207, 32
          %s209 = scalar_lea.vmem [#allocation2], %s208
          %s210 = smul.u32 4, %s15
          %s212 = ssub.s32 512, 512
          %213 = vsyncadd %s206, %s212
          %s214 = smul.addr %s210, 128
          %s215 = scalar_lea.hbm %s0, %s214
          %s216 = sshll.u32 %s209, 4
          %s217 = int_to_ptr.vmem [resolvable:$true] %s216
          %222 = dma.hbm_to_vmem [thread:$0]  %s215, 512, %s217, %s206, 128, 128, 8
        $region36: #{mlp_net_forward.1} parent=31 // pred_fallthru
          _
      $region32: #{mlp_net_forward.1} parent=5 // pred_fallthru
        _
      %p223 = scmp.le.s32.totalorder 1, %s15
      %p224 = scmp.lt.s32.totalorder %s15, 3
      %p225 = pnand %p223, %p224
      %p226 = pneg %p225
      // Predicated region
      $region37: #{mlp_net_forward.1} parent=5 // pred_check
        _
      $region38: #{mlp_net_forward.1} parent=5 // pred_check_branch
        %228 = sbr.rel (%p225) target = $region40
      $region39: #{mlp_net_forward.1} parent=5 // pred_region
        %s229 = ssub.s32 %s15, 1
        %s230 = sand.u32 %s28, 1
        %s231 = scalar_lea.sflag [#allocation3], %s230
        %s232 = sand.u32 %s28, 1
        %s233 = smul.addr %s232, 32
        %s234 = scalar_lea.vmem [#allocation2], %s233
        // Predicated region
        $region41: #{mlp_net_forward.1} parent=39 // pred_check
          %p235 = pneg %p41
        $region42: #{mlp_net_forward.1} parent=39 // pred_check_branch
          %237 = sbr.rel (%p235) target = $region44
        $region43: #{mlp_net_forward.1} parent=39 // pred_region
          %238 = dma.done %s231, 512
        $region44: #{mlp_net_forward.1} parent=39 // pred_fallthru
          _
        // Predicated region
        $region45: #{mlp_net_forward.1} parent=39 // pred_check
          %p239 = pneg %p62
        $region46: #{mlp_net_forward.1} parent=39 // pred_check_branch
          %241 = sbr.rel (%p239) target = $region48
        $region47: #{mlp_net_forward.1} parent=39 // pred_region
          %242 = dma.done [#allocation5], 512
        $region48: #{mlp_net_forward.1} parent=39 // pred_fallthru
          _
        // Predicated region
        $region49: #{mlp_net_forward.1} parent=39 // pred_check
          %p243 = pneg %p104
        $region50: #{mlp_net_forward.1} parent=39 // pred_check_branch
          %245 = sbr.rel (%p243) target = $region52
        $region51: #{mlp_net_forward.1} parent=39 // pred_region
          %246 = dma.done [#allocation5], 1024
        $region52: #{mlp_net_forward.1} parent=39 // pred_fallthru
          _
        %s247 = sand.u32 %s28, 1
        %s248 = scalar_lea.sflag [#allocation3], %s247
        %s249 = sand.u32 %s28, 1
        %s250 = smul.addr %s249, 32
        %s251 = scalar_lea.vmem [#allocation2], %s250
        %p252 = pneg %p41
        %p253 = pneg %p38
        %p254 = pneg %p62
        %p255 = pneg %p59
        %p256 = pneg %p83
        %p257 = pneg %p80
        %p258 = pneg %p104
        %p259 = pneg %p101
        %p260 = pneg %p125
        %p261 = pneg %p122
        %p262 = pneg %p151
        %p263 = pneg %p148
        %s264 = smul.u32 4, %s20
        %p265 = scmp.lt.s32.totalorder %s264, 7
        %s266 = scalar_select %p265, %s264, 7
        %s267 = smul.addr %s266, 8
        %s268 = scalar_lea.vmem %s5, %s267
        %s269 = smul.u32 4, %s20
        %s270 = smul.u32 4, %s20
        %p271 = scmp.lt.s32.totalorder %s270, 7
        %s272 = scalar_select %p271, %s270, 7
        %s273 = smul.addr %s272, 8
        %s274 = scalar_lea.vmem %s5, %s273
        %s275 = smul.u32 4, %s20
        %v277 = vld [vmem:[%s234] sm:$0xff]
        %v278 = vld [vmem:[%s234 + $0x8] sm:$0xff]
        %v279 = vld [vmem:[%s234 + $0x10] sm:$0xff]
        %v280 = vld [vmem:[%s234 + $0x18] sm:$0xff]
        %v281 = vpack.c.bf16 %v278, %v277
        %v282 = vpack.c.bf16 %v280, %v279
        %v283 = vld [vmem:[#allocation4] sm:$0xf]
        %v284 = vld [vmem:[#allocation4 + $0x4] sm:$0xf]
        %v285 = vld [vmem:[#allocation4 + $0x8] sm:$0xf]
        %v286 = vld [vmem:[#allocation4 + $0xc] sm:$0xf]
        %v287 = vld [vmem:[#allocation4 + $0x10] sm:$0xf]
        %v288 = vld [vmem:[#allocation4 + $0x14] sm:$0xf]
        %v289 = vld [vmem:[#allocation4 + $0x18] sm:$0xf]
        %v290 = vld [vmem:[#allocation4 + $0x1c] sm:$0xf]
        %v291 = vld [vmem:[%s2] sm:$0x1]
        %v293 = vlaneseq
        %v294 = vshrl.u32 %v293, 7
        %v295 = vsub.s32 0, %v294
        %v296 = vrot.slane %v291, %v295
        %v306 = vunpack.c.l.b16 %v283
        %v307 = vunpack.c.l.b16 %v284
        %v308 = vunpack.c.l.b16 %v285
        %v309 = vunpack.c.l.b16 %v286
        %v310 = vunpack.c.l.b16 %v287
        %v311 = vunpack.c.l.b16 %v288
        %v312 = vunpack.c.l.b16 %v289
        %v313 = vunpack.c.l.b16 %v290
        %v314 = vpack.c.b16 %v307, %v306
        %v315 = vpack.c.b16 %v309, %v308
        %v316 = vpack.c.b16 %v311, %v310
        %v317 = vpack.c.b16 %v313, %v312
        %vm322 = vcmask 523264
        %v324 = vsel %vm322, %v281, 0
        %v327 = vsel %vm322, %v282, 0
        %329 = vmatprep.subr.bf16.mxu0 0
        %330 = vmatpush1.bf16.msra.mxu0 0
        %331 = vmatprep.subr.bf16.mxu0 0
        %332 = vmatpush1.bf16.msra.mxu0 0
        %333 = vmatprep.subr.bf16.mxu0 0
        %334 = vmatpush1.bf16.msra.mxu0 0
        %335 = vmatprep.subr.bf16.mxu0 0
        %336 = vmatpush1.bf16.msra.mxu0 0
        %337 = vmatprep.subr.bf16.mxu0 0
        %338 = vmatpush1.bf16.msra.mxu0 %v317
        %339 = vmatprep.subr.bf16.mxu0 0
        %340 = vmatpush1.bf16.msra.mxu0 %v316
        %341 = vmatprep.subr.bf16.mxu0 0
        %342 = vmatpush1.bf16.msra.mxu0 %v315
        %343 = vmatprep.subr.bf16.mxu0 0
        %344 = vmatpush1.bf16.msra.mxu0 %v314
        %345 = vmatprep.subr.bf16.mxu0 0
        %346 = vmatpush2.bf16.msra.mxu0 0
        %347 = vmatprep.subr.bf16.mxu0 0
        %348 = vmatpush2.bf16.msra.mxu0 0
        %349 = vmatprep.subr.bf16.mxu0 0
        %350 = vmatpush2.bf16.msra.mxu0 0
        %351 = vmatprep.subr.bf16.mxu0 0
        %352 = vmatpush2.bf16.msra.mxu0 0
        %353 = vmatprep.subr.bf16.mxu0 0
        %354 = vmatpush2.bf16.msra.mxu0 0
        %355 = vmatprep.subr.bf16.mxu0 0
        %356 = vmatpush2.bf16.msra.mxu0 0
        %357 = vmatprep.subr.bf16.mxu0 0
        %358 = vmatpush2.bf16.msra.mxu0 0
        %359 = vmatprep.subr.bf16.mxu0 0
        %360 = vmatpush2.bf16.msra.mxu0 0
        %361 = vmatprep.mubr.bf16.mxu0 0
        %362 = vmatmul.mubr.bf16.gmra.mxu0 %v324
        %v363 = vpop.f32.mrf.mxu0
        %v364 = vadd.f32 %v296, %v363
        %v365 = vpop.f32.mrf.mxu0
        %v366 = vpop.f32.mrf.mxu0
        %v367 = vadd.f32 %v296, %v366
        %v368 = vpop.f32.mrf.mxu0
        %369 = vmatprep.mubr.bf16.mxu0 0
        %370 = vmatmul.mubr.bf16.gmra.mxu0 %v327
        %v371 = vpop.f32.mrf.mxu0
        %v372 = vadd.f32 %v296, %v371
        %v373 = vpop.f32.mrf.mxu0
        %v374 = vpop.f32.mrf.mxu0
        %v375 = vadd.f32 %v296, %v374
        %v376 = vpop.f32.mrf.mxu0
        %377 = vdwg.mxu0
        %v378 = vmax.f32 %v364, 0.0
        %v379 = vmax.f32 %v367, 0.0
        %v380 = vmax.f32 %v372, 0.0
        %v381 = vmax.f32 %v375, 0.0
        %v382 = vpack.c.bf16 %v379, %v378
        %v383 = vpack.c.bf16 %v381, %v380
        %v384 = vld [vmem:[#allocation6] sm:$0xf]
        %v385 = vld [vmem:[#allocation6 + $0x4] sm:$0xf]
        %v386 = vld [vmem:[#allocation6 + $0x8] sm:$0xf]
        %v387 = vld [vmem:[#allocation6 + $0xc] sm:$0xf]
        %v388 = vld [vmem:[#allocation6 + $0x10] sm:$0xf]
        %v389 = vld [vmem:[#allocation6 + $0x14] sm:$0xf]
        %v390 = vld [vmem:[#allocation6 + $0x18] sm:$0xf]
        %v391 = vld [vmem:[#allocation6 + $0x1c] sm:$0xf]
        %v392 = vld [vmem:[#allocation6 + $0x20] sm:$0xf]
        %v393 = vld [vmem:[#allocation6 + $0x24] sm:$0xf]
        %v394 = vld [vmem:[#allocation6 + $0x28] sm:$0xf]
        %v395 = vld [vmem:[#allocation6 + $0x2c] sm:$0xf]
        %v396 = vld [vmem:[#allocation6 + $0x30] sm:$0xf]
        %v397 = vld [vmem:[#allocation6 + $0x34] sm:$0xf]
        %v398 = vld [vmem:[#allocation6 + $0x38] sm:$0xf]
        %v399 = vld [vmem:[#allocation6 + $0x3c] sm:$0xf]
        %v400 = vld [vmem:[%s4] sm:$0x1]
        %v402 = vlaneseq
        %v403 = vshrl.u32 %v402, 7
        %v404 = vsub.s32 0, %v403
        %v405 = vrot.slane %v400, %v404
        %v423 = vunpack.c.l.b16 %v384
        %v424 = vunpack.c.l.b16 %v385
        %v425 = vunpack.c.l.b16 %v386
        %v426 = vunpack.c.l.b16 %v387
        %v427 = vunpack.c.l.b16 %v388
        %v428 = vunpack.c.l.b16 %v389
        %v429 = vunpack.c.l.b16 %v390
        %v430 = vunpack.c.l.b16 %v391
        %v431 = vunpack.c.l.b16 %v392
        %v432 = vunpack.c.l.b16 %v393
        %v433 = vunpack.c.l.b16 %v394
        %v434 = vunpack.c.l.b16 %v395
        %v435 = vunpack.c.l.b16 %v396
        %v436 = vunpack.c.l.b16 %v397
        %v437 = vunpack.c.l.b16 %v398
        %v438 = vunpack.c.l.b16 %v399
        %v439 = vpack.c.b16 %v424, %v423
        %v440 = vpack.c.b16 %v426, %v425
        %v441 = vpack.c.b16 %v428, %v427
        %v442 = vpack.c.b16 %v430, %v429
        %v443 = vpack.c.b16 %v432, %v431
        %v444 = vpack.c.b16 %v434, %v433
        %v445 = vpack.c.b16 %v436, %v435
        %v446 = vpack.c.b16 %v438, %v437
        %455 = vmatprep.subr.bf16.mxu0 0
        %456 = vmatpush1.bf16.msra.mxu0 %v446
        %457 = vmatprep.subr.bf16.mxu0 0
        %458 = vmatpush1.bf16.msra.mxu0 %v445
        %459 = vmatprep.subr.bf16.mxu0 0
        %460 = vmatpush1.bf16.msra.mxu0 %v444
        %461 = vmatprep.subr.bf16.mxu0 0
        %462 = vmatpush1.bf16.msra.mxu0 %v443
        %463 = vmatprep.subr.bf16.mxu0 0
        %464 = vmatpush1.bf16.msra.mxu0 %v442
        %465 = vmatprep.subr.bf16.mxu0 0
        %466 = vmatpush1.bf16.msra.mxu0 %v441
        %467 = vmatprep.subr.bf16.mxu0 0
        %468 = vmatpush1.bf16.msra.mxu0 %v440
        %469 = vmatprep.subr.bf16.mxu0 0
        %470 = vmatpush1.bf16.msra.mxu0 %v439
        %471 = vmatprep.subr.bf16.mxu0 0
        %472 = vmatpush2.bf16.msra.mxu0 0
        %473 = vmatprep.subr.bf16.mxu0 0
        %474 = vmatpush2.bf16.msra.mxu0 0
        %475 = vmatprep.subr.bf16.mxu0 0
        %476 = vmatpush2.bf16.msra.mxu0 0
        %477 = vmatprep.subr.bf16.mxu0 0
        %478 = vmatpush2.bf16.msra.mxu0 0
        %479 = vmatprep.subr.bf16.mxu0 0
        %480 = vmatpush2.bf16.msra.mxu0 0
        %481 = vmatprep.subr.bf16.mxu0 0
        %482 = vmatpush2.bf16.msra.mxu0 0
        %483 = vmatprep.subr.bf16.mxu0 0
        %484 = vmatpush2.bf16.msra.mxu0 0
        %485 = vmatprep.subr.bf16.mxu0 0
        %486 = vmatpush2.bf16.msra.mxu0 0
        %487 = vmatprep.mubr.bf16.mxu0 0
        %488 = vmatmul.mubr.bf16.gmra.mxu0 %v382
        %v489 = vpop.f32.mrf.mxu0
        %v490 = vadd.f32 %v405, %v489
        %v491 = vpop.f32.mrf.mxu0
        %v492 = vpop.f32.mrf.mxu0
        %v493 = vadd.f32 %v405, %v492
        %v494 = vpop.f32.mrf.mxu0
        %495 = vmatprep.mubr.bf16.mxu0 0
        %496 = vmatmul.mubr.bf16.gmra.mxu0 %v383
        %v497 = vpop.f32.mrf.mxu0
        %v498 = vadd.f32 %v405, %v497
        %v499 = vpop.f32.mrf.mxu0
        %v500 = vpop.f32.mrf.mxu0
        %v501 = vadd.f32 %v405, %v500
        %v502 = vpop.f32.mrf.mxu0
        %503 = vdwg.mxu0
        %504 = vst [vmem:[%s274] sm:$0xff] %v490
        %505 = vst [vmem:[%s274 + $0x8] sm:$0xff] %v493
        %506 = vst [vmem:[%s274 + $0x10] sm:$0xff] %v498
        %507 = vst [vmem:[%s274 + $0x18] sm:$0xff] %v501
        %s508 = smul.u32 4, %s20
        %p509 = scmp.lt.s32.totalorder %s508, 7
        %s510 = scalar_select %p509, %s508, 7
        %s511 = smul.addr %s510, 8
        %s512 = scalar_lea.vmem %s5, %s511
        // Predicated region
        $region53: #{mlp_net_forward.1} parent=39 // pred_check
          %p513 = pneg %p148
        $region54: #{mlp_net_forward.1} parent=39 // pred_check_branch
          %515 = sbr.rel (%p513) target = $region56
        $region55: #{mlp_net_forward.1} parent=39 // pred_region
          %s516 = smul.u32 4, %s20
        $region56: #{mlp_net_forward.1} parent=39 // pred_fallthru
          _
      $region40: #{mlp_net_forward.1} parent=5 // pred_fallthru
        _
      %p517 = scmp.le.s32.totalorder 2, %s15
      // Predicated region
      $region57: #{mlp_net_forward.1} parent=5 // pred_check
        %p518 = pneg %p517
      $region58: #{mlp_net_forward.1} parent=5 // pred_check_branch
        %520 = sbr.rel (%p518) target = $region60
      $region59: #{mlp_net_forward.1} parent=5 // pred_region
        %s521 = ssub.s32 %s15, 2
        // Predicated region
        $region61: #{mlp_net_forward.1} parent=59 // pred_check
          %p522 = pneg %p154
        $region62: #{mlp_net_forward.1} parent=59 // pred_check_branch
          %524 = sbr.rel (%p522) target = $region64
        $region63: #{mlp_net_forward.1} parent=59 // pred_region
          %s525 = smul.u32 4, %s21
          %p526 = scmp.lt.s32.totalorder %s525, 7
          %s527 = scalar_select %p526, %s525, 7
          %s528 = smul.addr %s527, 8
          %s529 = scalar_lea.vmem %s5, %s528
        $region64: #{mlp_net_forward.1} parent=59 // pred_fallthru
          _
      $region60: #{mlp_net_forward.1} parent=5 // pred_fallthru
        _
    $region6: #{mlp_net_forward.1} parent=1 // loop_footer
      %s19 = sadd.s32 1, %s15
    $region7: #{mlp_net_forward.1} parent=1 // loop_footer_branch
      %14 = sbr.rel target = $region3
    $region8: #{mlp_net_forward.1} parent=1 // loop_exit
      _
    %530 = vsyncpa [#allocation3], 1
    %s531 = scalar_lea.sflag [#allocation3], 1
    %532 = vsyncpa %s531, 1
    %533 = vsyncpa [#allocation5], 1

</llo_original>
